<compile_context>
chip_gen: v7x
topology: tpu7x:2x2x1
jax: 0.10.0
libtpu: 0.0.40
codegen_flags: <defaults>
</compile_context>

<pallas_src>
import functools
import math

import jax
import jax.numpy as jnp
from jax.experimental import pallas as pl
from jax.experimental.pallas import tpu as pltpu

VMEM_LIMIT_BYTES = 48 * 1024 * 1024  # safe on v5e/v6e (128 MiB) and v7x (64 MiB)


def _round_up(x, m):
    return (x + m - 1) // m * m


def _tap_shifts(wp, margin):
    # flat-index shift of tap (dh, dw) in a row-major (Hp, Wp) padded grid
    return [margin + (dh - 1) * wp + (dw - 1) for dh in range(3) for dw in range(3)]


# ----------------------------------------------------------------------------
# Pallas kernels
# ----------------------------------------------------------------------------
def _dense_kernel(x_ref, w_ref, b_ref, o_ref, *, relu):
    """x: [M, Cin] bf16, w: [Cin, Cout] bf16, b: [1, Cout] f32 -> o: [M, Cout] bf16."""
    acc = jnp.dot(x_ref[...], w_ref[...], preferred_element_type=jnp.float32)
    acc = acc + b_ref[...]
    if relu:
        acc = jnp.maximum(acc, 0.0)
    o_ref[...] = acc.astype(o_ref.dtype)


def _conv_stack_kernel(x_ref, mask_ref, w_ref, b_ref, o_ref, buf, acc_ref,
                       *, wp, margin):
    """Fused stack of L conv3x3(same)+ReLU layers.

    x_ref    : [M, C]   bf16, flattened zero-padded feature map (M = N*Hp*Wp)
    mask_ref : [M, 1]   f32, 1.0 at interior (non-padding) rows
    w_ref    : [L, 9, C, C] bf16, b_ref: [L, 1, C] f32
    o_ref    : [M, C]   bf16 (interior rows valid; padding rows zeroed)
    buf      : [M + 2*margin, C] bf16 VMEM scratch (activation stays resident)
    acc_ref  : [M, C]   f32 VMEM accumulator scratch
    """
    M, C = x_ref.shape
    n_layers = w_ref.shape[0]
    shifts = _tap_shifts(wp, margin)
    mask = mask_ref[...]

    buf[...] = jnp.zeros_like(buf)                 # zero halo margins once
    buf[pl.ds(margin, M), :] = x_ref[...]
    for layer in range(n_layers):
        acc_ref[...] = jnp.zeros_like(acc_ref)
        for t in range(9):                         # 9 shifted views = 9 MXU matmuls
            acc_ref[...] += jnp.dot(buf[pl.ds(shifts[t], M), :], w_ref[layer, t],
                                    preferred_element_type=jnp.float32)
        act = jnp.maximum(acc_ref[...] + b_ref[layer], 0.0) * mask
        if layer + 1 < n_layers:
            buf[pl.ds(margin, M), :] = act.astype(buf.dtype)
        else:
            o_ref[...] = act.astype(o_ref.dtype)


def _dual_head_kernel(x_ref, mask_ref,
                      wc_ref, bc_ref, wcf_ref, bcf_ref,
                      wr_ref, br_ref, wrf_ref, brf_ref,
                      cls_ref, reg_ref,
                      buf, acc_ref, accf_ref,
                      *, wp, margin):
    """Both RetinaNet heads for one pyramid level in a single kernel.

    Each head: 4x (conv3x3 + ReLU) then a final conv3x3 (Cout padded to 128).
    The shared input feature tile and all 10 weight tensors are VMEM-resident;
    no intermediate activation touches HBM.
    """
    M, C = x_ref.shape
    shifts = _tap_shifts(wp, margin)
    mask = mask_ref[...]

    def conv9(acc, get_w):
        acc[...] = jnp.zeros_like(acc)
        for t in range(9):
            acc[...] += jnp.dot(buf[pl.ds(shifts[t], M), :], get_w(t),
                                preferred_element_type=jnp.float32)

    def run_tower(w_t, b_t, w_f, b_f, out_ref):
        buf[...] = jnp.zeros_like(buf)
        buf[pl.ds(margin, M), :] = x_ref[...]      # (re)load shared input tile
        for layer in range(w_t.shape[0]):
            conv9(acc_ref, lambda t: w_t[layer, t])
            act = jnp.maximum(acc_ref[...] + b_t[layer], 0.0) * mask
            buf[pl.ds(margin, M), :] = act.astype(buf.dtype)
        conv9(accf_ref, lambda t: w_f[t])
        out_ref[...] = (accf_ref[...] + b_f[...]).astype(out_ref.dtype)

    run_tower(wc_ref, bc_ref, wcf_ref, bcf_ref, cls_ref)
    run_tower(wr_ref, br_ref, wrf_ref, brf_ref, reg_ref)


# ----------------------------------------------------------------------------
# Wrappers
# ----------------------------------------------------------------------------
def dense(x, w, b, relu=False, block_m=1024):
    """x: [M, Cin] @ w: [Cin, Cout] + b, optional ReLU, tiled over M when large."""
    M, Cin = x.shape
    Cout = w.shape[-1]
    if M % block_m != 0:
        block_m = M
    return pl.pallas_call(
        functools.partial(_dense_kernel, relu=relu),
        out_shape=jax.ShapeDtypeStruct((M, Cout), jnp.bfloat16),
        grid_spec=pltpu.PrefetchScalarGridSpec(
            num_scalar_prefetch=0,
            grid=(M // block_m,),
            in_specs=[pl.BlockSpec((block_m, Cin), lambda i: (i, 0)),
                      pl.BlockSpec((Cin, Cout), lambda i: (0, 0)),
                      pl.BlockSpec((1, Cout), lambda i: (0, 0))],
            out_specs=pl.BlockSpec((block_m, Cout), lambda i: (i, 0)),
        ),
        compiler_params=pltpu.CompilerParams(
            dimension_semantics=("parallel",),
            vmem_limit_bytes=VMEM_LIMIT_BYTES),
    )(x.astype(jnp.bfloat16), w, b)


def _interior_mask(n, hp, wp):
    ii = jnp.arange(hp)
    jj = jnp.arange(wp)
    m = ((ii[:, None] >= 1) & (ii[:, None] <= hp - 2)
         & (jj[None, :] >= 1) & (jj[None, :] <= wp - 2))
    m = jnp.broadcast_to(m.reshape(1, hp * wp), (n, hp * wp))
    return m.reshape(n * hp * wp, 1).astype(jnp.float32)


def _flatten_padded(x):
    n, h, w, c = x.shape
    hp, wp = h + 2, w + 2
    xp = jnp.pad(x, ((0, 0), (1, 1), (1, 1), (0, 0)))
    return xp.reshape(n * hp * wp, c), hp, wp


def conv3x3_stack(x, w_stack, b_stack):
    """L fused conv3x3(same)+ReLU layers in one pallas_call.

    x: [N, H, W, C], w_stack: [L, 9, C, C] bf16, b_stack: [L, 1, C] f32.
    """
    x = x.astype(jnp.bfloat16)
    N, H, W, C = x.shape
    xf, HP, WP = _flatten_padded(x)
    M = N * HP * WP
    margin = _round_up(WP + 1, 16)
    mask = _interior_mask(N, HP, WP)
    out = pl.pallas_call(
        functools.partial(_conv_stack_kernel, wp=WP, margin=margin),
        out_shape=jax.ShapeDtypeStruct((M, C), jnp.bfloat16),
        scratch_shapes=[pltpu.VMEM((M + 2 * margin, C), jnp.bfloat16),
                        pltpu.VMEM((M, C), jnp.float32)],
        compiler_params=pltpu.CompilerParams(vmem_limit_bytes=VMEM_LIMIT_BYTES),
    )(xf, mask, w_stack, b_stack)
    return out.reshape(N, HP, WP, C)[:, 1:H + 1, 1:W + 1, :]


def dual_head_level(feat, hparams, num_anchors, num_classes):
    """Run the fused cls+reg head kernel on one pyramid level."""
    feat = feat.astype(jnp.bfloat16)
    N, H, W, C = feat.shape
    xf, HP, WP = _flatten_padded(feat)
    M = N * HP * WP
    margin = _round_up(WP + 1, 16)
    mask = _interior_mask(N, HP, WP)
    Kp = hparams["wcf"].shape[-1]
    Rp = hparams["wrf"].shape[-1]
    assert Kp == Rp  # both padded to the same lane-dense width (128)

    cls_f, reg_f = pl.pallas_call(
        functools.partial(_dual_head_kernel, wp=WP, margin=margin),
        out_shape=(jax.ShapeDtypeStruct((M, Kp), jnp.float32),
                   jax.ShapeDtypeStruct((M, Rp), jnp.float32)),
        scratch_shapes=[pltpu.VMEM((M + 2 * margin, C), jnp.bfloat16),
                        pltpu.VMEM((M, C), jnp.float32),
                        pltpu.VMEM((M, Kp), jnp.float32)],
        compiler_params=pltpu.CompilerParams(vmem_limit_bytes=VMEM_LIMIT_BYTES),
    )(xf, mask,
      hparams["wc"], hparams["bc"], hparams["wcf"], hparams["bcf"],
      hparams["wr"], hparams["br"], hparams["wrf"], hparams["brf"])

    A, K = num_anchors, num_classes
    cls = cls_f.reshape(N, HP, WP, Kp)[:, 1:H + 1, 1:W + 1, :A * K]
    cls = cls.reshape(N, H * W * A, K)                 # matches torchvision layout
    reg = reg_f.reshape(N, HP, WP, Rp)[:, 1:H + 1, 1:W + 1, :A * 4]
    reg = reg.reshape(N, H * W * A, 4)
    return cls, reg


# ----------------------------------------------------------------------------
# Model
# ----------------------------------------------------------------------------
def _space_to_depth(x, r):
    N, H, W, C = x.shape
    x = x.reshape(N, H // r, r, W // r, r, C)
    x = x.transpose(0, 1, 3, 2, 4, 5)
    return x.reshape(N, H // r, W // r, r * r * C)


class RetinaNetPallas:
    """Synthetic-weight RetinaNet: small fused-Pallas conv backbone (2 pyramid
    levels) + exact-structure RetinaNet classification / regression heads."""

    def __init__(self, num_classes=14, num_anchors=9, seed=0):
        self.num_classes = num_classes
        self.num_anchors = num_anchors
        C = 256
        self.channels = C
        self.patch = 4

        keys = iter(jax.random.split(jax.random.PRNGKey(seed), 32))

        def nrm(shape, std):
            return jax.random.normal(next(keys), shape, jnp.float32) * std

        def conv_stack_params(n_layers, std):
            w = jnp.stack([nrm((3, 3, C, C), std).reshape(9, C, C)
                           for _ in range(n_layers)])            # [L, 9, C, C]
            return w.astype(jnp.bfloat16), jnp.zeros((n_layers, 1, C), jnp.float32)

        # --- simplified backbone ---
        # TODO(synk): pretrained ResNet50+FPN backbone not reproduced; replaced by a
        # small deterministic Pallas backbone producing two 256-channel levels.
        self.stem_w = nrm((3 * self.patch * self.patch, C), 0.05).astype(jnp.bfloat16)
        self.stem_b = jnp.zeros((1, C), jnp.float32)
        self.p3_w, self.p3_b = conv_stack_params(1, 0.02)
        self.p4_proj_w = nrm((4 * C, C), 0.02).astype(jnp.bfloat16)
        self.p4_proj_b = jnp.zeros((1, C), jnp.float32)
        self.p4_w, self.p4_b = conv_stack_params(1, 0.02)

        # --- RetinaNetClassificationHead / RetinaNetRegressionHead ---
        A, K = num_anchors, num_classes
        kc, kr = A * K, A * 4                       # 126, 36
        kp = _round_up(max(kc, kr), 128)            # lane-dense padded Cout = 128

        wc, bc = conv_stack_params(4, 0.01)
        wr, br = conv_stack_params(4, 0.01)

        prior = 0.01
        wcf = nrm((3, 3, C, kc), 0.01).reshape(9, C, kc)
        wcf = jnp.pad(wcf, ((0, 0), (0, 0), (0, kp - kc))).astype(jnp.bfloat16)
        bcf = jnp.pad(jnp.full((kc,), -math.log((1.0 - prior) / prior), jnp.float32),
                      (0, kp - kc)).reshape(1, kp)

        wrf = nrm((3, 3, C, kr), 0.01).reshape(9, C, kr)
        wrf = jnp.pad(wrf, ((0, 0), (0, 0), (0, kp - kr))).astype(jnp.bfloat16)
        brf = jnp.zeros((1, kp), jnp.float32)

        self.head_params = dict(wc=wc, bc=bc, wcf=wcf, bcf=bcf,
                                wr=wr, br=br, wrf=wrf, brf=brf)

    # ---- backbone: two 256-channel pyramid levels (P3, P4) ----
    def backbone(self, images_nchw):
        x = jnp.transpose(images_nchw, (0, 2, 3, 1)).astype(jnp.bfloat16)  # NCHW->NHWC
        x = _space_to_depth(x, self.patch)                    # [N, H/4, W/4, 48]
        N, H, W, Cp = x.shape
        x = dense(x.reshape(N * H * W, Cp), self.stem_w, self.stem_b, relu=True)
        c3 = x.reshape(N, H, W, self.channels)
        p3 = conv3x3_stack(c3, self.p3_w, self.p3_b)          # [N, H/4, W/4, 256]

        x4 = _space_to_depth(p3, 2)                           # [N, H/8, W/8, 1024]
        N4, H4, W4, C4 = x4.shape
        x4 = dense(x4.reshape(N4 * H4 * W4, C4),
                   self.p4_proj_w, self.p4_proj_b, relu=True)
        p4 = conv3x3_stack(x4.reshape(N4, H4, W4, self.channels),
                           self.p4_w, self.p4_b)              # [N, H/8, W/8, 256]
        return [p3, p4]

    def __call__(self, images, targets=None):
        # TODO(synk): training loss path (targets) and eval post-processing
        # (anchor generation, box decoding, sigmoid/top-k, NMS) have no clean
        # Pallas equivalent; returning the raw detection-head outputs instead.
        feats = self.backbone(images)
        cls_list, reg_list = [], []
        for f in feats:
            c, r = dual_head_level(f, self.head_params,
                                   self.num_anchors, self.num_classes)
            cls_list.append(c)
            reg_list.append(r)
        return {"cls_logits": jnp.concatenate(cls_list, axis=1),
                "bbox_regression": jnp.concatenate(reg_list, axis=1)}


# ----------------------------------------------------------------------------
if __name__ == "__main__":
    key = jax.random.PRNGKey(0)
    # PyTorch-convention NCHW images, small size.
    images = jax.random.normal(key, (2, 3, 32, 32), jnp.float32)

    model = RetinaNetPallas(num_classes=14, num_anchors=9, seed=0)
    out = model(images)
    out = jax.block_until_ready(out)

    # P3 = 8x8, P4 = 4x4 -> (64 + 16) * 9 anchors = 720 locations.
    assert out["cls_logits"].shape == (2, 720, 14), out["cls_logits"].shape
    assert out["bbox_regression"].shape == (2, 720, 4), out["bbox_regression"].shape
    assert bool(jnp.all(jnp.isfinite(out["cls_logits"])))
    assert bool(jnp.all(jnp.isfinite(out["bbox_regression"])))
    print("KERNEL_OK")
</pallas_src>

<mosaic_0001>
module attributes {stable_mosaic.version = 11 : i64} {
  func.func @_dense_kernel(%arg0: i32, %arg1: memref<128x48xbf16, #tpu.memory_space<vmem>>, %arg2: memref<48x256xbf16, #tpu.memory_space<vmem>>, %arg3: memref<1x256xf32, #tpu.memory_space<vmem>>, %arg4: memref<128x256xbf16, #tpu.memory_space<vmem>>) attributes {dimension_semantics = [#tpu.dimension_semantics<parallel>], iteration_bounds = array<i64: 1>, scalar_prefetch = 0 : i64, scratch_operands = 0 : i64, tpu.core_type = #tpu.core_type<tc>, window_params = [{transform_indices = @transform_0, window_bounds = array<i64: 128, 48>}, {pipeline_mode = #tpu.pipeline_mode<synchronous>, transform_indices = @transform_1, window_bounds = array<i64: 48, 256>}, {pipeline_mode = #tpu.pipeline_mode<synchronous>, transform_indices = @transform_2, window_bounds = array<i64: 1, 256>}, {transform_indices = @transform_3, window_bounds = array<i64: 128, 256>}]} {
    %c0 = arith.constant 0 : index
    %c0_0 = arith.constant 0 : index
    %0 = vector.load %arg1[%c0, %c0_0] : memref<128x48xbf16, #tpu.memory_space<vmem>>, vector<128x48xbf16>
    %c0_1 = arith.constant 0 : index
    %c0_2 = arith.constant 0 : index
    %1 = vector.load %arg2[%c0_1, %c0_2] : memref<48x256xbf16, #tpu.memory_space<vmem>>, vector<48x256xbf16>
    %cst = arith.constant dense<0.000000e+00> : vector<128x256xf32>
    %2 = tpu.matmul %0, %1, %cst {dimension_numbers = #tpu.dot_dimension_numbers<[1], [0], [0], [1], [0, 0, 1, 1], [], []>} : vector<128x48xbf16>, vector<48x256xbf16>, vector<128x256xf32> -> vector<128x256xf32>
    %c0_3 = arith.constant 0 : index
    %c0_4 = arith.constant 0 : index
    %3 = vector.load %arg3[%c0_3, %c0_4] : memref<1x256xf32, #tpu.memory_space<vmem>>, vector<1x256xf32>
    %4 = vector.broadcast %3 : vector<1x256xf32> to vector<128x256xf32>
    %5 = arith.addf %2, %4 : vector<128x256xf32>
    %cst_5 = arith.constant 0.000000e+00 : f32
    %6 = vector.broadcast %cst_5 : f32 to vector<128x256xf32>
    %7 = arith.maximumf %5, %6 : vector<128x256xf32>
    %8 = arith.truncf %7 : vector<128x256xf32> to vector<128x256xbf16>
    %c0_6 = arith.constant 0 : index
    %c0_7 = arith.constant 0 : index
    %9 = vector.load %arg4[%c0_6, %c0_7] : memref<128x256xbf16, #tpu.memory_space<vmem>>, vector<128x256xbf16>
    tpu.vector_store %arg4[%c0_6, %c0_7], %8 {strides = array<i32>} : memref<128x256xbf16, #tpu.memory_space<vmem>>, vector<128x256xbf16>,
    return
  }
  func.func @transform_0(%arg0: i32) -> (i32, i32) {
    %c0_i32 = arith.constant 0 : i32
    %c0_i32_0 = arith.constant 0 : i32
    return %arg0, %c0_i32 : i32, i32
  }
  func.func @transform_1(%arg0: i32) -> (i32, i32) {
    %c0_i32 = arith.constant 0 : i32
    %c0_i32_0 = arith.constant 0 : i32
    %c0_i32_1 = arith.constant 0 : i32
    return %c0_i32, %c0_i32_0 : i32, i32
  }
  func.func @transform_2(%arg0: i32) -> (i32, i32) {
    %c0_i32 = arith.constant 0 : i32
    %c0_i32_0 = arith.constant 0 : i32
    %c0_i32_1 = arith.constant 0 : i32
    return %c0_i32, %c0_i32_0 : i32, i32
  }
  func.func @transform_3(%arg0: i32) -> (i32, i32) {
    %c0_i32 = arith.constant 0 : i32
    %c0_i32_0 = arith.constant 0 : i32
    return %arg0, %c0_i32 : i32, i32
  }
}

</mosaic_0001>

<llo_original>
// kernel: tpu_custom_call.1
$region0: #{tpu_custom_call.1}
  #allocation0 [shape = 'u32[]', space=smem, size = 0x4, offset = 0x4, fixed_abs, tag = 'smem constant byte address 0x4 - core index']
  #allocation1 [shape = 'u32[144,128]{1,0:T(1,128)}', space=vmem, size = 0x12000, scoped, tag = 'internal scratch']
  %s0 = inlined_call_operand.vmem [shape: bf16[128,48], index: 0, kind: input, shape index: {}]
  %s1 = inlined_call_operand.vmem [shape: bf16[48,256], index: 1, kind: input, shape index: {}]
  %s2 = inlined_call_operand.vmem [shape: f32[1,256], index: 2, kind: input, shape index: {}]
  %s3 = inlined_call_operand.hbm [shape: bf16[128,256], index: 3, kind: output, shape index: {}]
  %s4 = sld [smem:[#allocation0]]
  $region22: #{tpu_custom_call.1} parent=0
    _
  %s6 = ssub.s32 1, %s4
  %s7 = scalar_select 0, %s6, %s4
  $region1: #{tpu_custom_call.1} parent=0
    #allocation2 [shape = 'u8[65536]{0}', space=vmem, size = 0x10000, scoped, tag = 'output window, operand 0, single buffered']
    #allocation3 [shape = 's32[1]{0}', space=sflag, size = 0x4, scoped, tag = 'scoped memory for tpu_custom_call.1']
    %8 = vsyncpa [#allocation3], 0
    // Predicated region
    $region2: #{tpu_custom_call.1} parent=1 // pred_check
      _
    $region3: #{tpu_custom_call.1} parent=1 // pred_check_branch
      %10 = sbr.rel (0) target = $region5
    $region4: #{tpu_custom_call.1} parent=1 // pred_region
      _
    $region5: #{tpu_custom_call.1} parent=1 // pred_fallthru
      _
    // Predicated region
    $region6: #{tpu_custom_call.1} parent=1 // pred_check
      _
    $region7: #{tpu_custom_call.1} parent=1 // pred_check_branch
      %12 = sbr.rel (0) target = $region9
    $region8: #{tpu_custom_call.1} parent=1 // pred_region
      _
    $region9: #{tpu_custom_call.1} parent=1 // pred_fallthru
      _
    // Predicated region
    $region10: #{tpu_custom_call.1} parent=1 // pred_check
      _
    $region11: #{tpu_custom_call.1} parent=1 // pred_check_branch
      %14 = sbr.rel (0) target = $region13
    $region12: #{tpu_custom_call.1} parent=1 // pred_region
      _
    $region13: #{tpu_custom_call.1} parent=1 // pred_fallthru
      _
    %v16 = vld [vmem:[%s0] sm:$0xf]
    %v17 = vld [vmem:[%s0 + $0x4] sm:$0xf]
    %v18 = vld [vmem:[%s0 + $0x8] sm:$0xf]
    %v19 = vld [vmem:[%s0 + $0xc] sm:$0xf]
    %v20 = vld [vmem:[%s0 + $0x10] sm:$0xf]
    %v21 = vld [vmem:[%s0 + $0x14] sm:$0xf]
    %v22 = vld [vmem:[%s0 + $0x18] sm:$0xf]
    %v23 = vld [vmem:[%s0 + $0x1c] sm:$0xf]
    %v24 = vld [vmem:[%s0 + $0x20] sm:$0xf]
    %v25 = vld [vmem:[%s0 + $0x24] sm:$0xf]
    %v26 = vld [vmem:[%s0 + $0x28] sm:$0xf]
    %v27 = vld [vmem:[%s0 + $0x2c] sm:$0xf]
    %v28 = vld [vmem:[%s0 + $0x30] sm:$0xf]
    %v29 = vld [vmem:[%s0 + $0x34] sm:$0xf]
    %v30 = vld [vmem:[%s0 + $0x38] sm:$0xf]
    %v31 = vld [vmem:[%s0 + $0x3c] sm:$0xf]
    %v32 = vld [vmem:[%s1] sm:$0xff]
    %v33 = vld [vmem:[%s1 + $0x8] sm:$0xff]
    %v34 = vld [vmem:[%s1 + $0x10] sm:$0xff]
    %v35 = vld [vmem:[%s1 + $0x18] sm:$0xff]
    %v36 = vld [vmem:[%s1 + $0x20] sm:$0xff]
    %v37 = vld [vmem:[%s1 + $0x28] sm:$0xff]
    %v38 = vld [vmem:[%s2] sm:$0x3]
    %v40 = vlaneseq
    %v41 = vshrl.u32 %v40, 7
    %v42 = vsub.s32 0, %v41
    %v43 = vrot.slane %v38, %v42
    %v44 = vlaneseq
    %v45 = vshrl.u32 %v44, 7
    %v46 = vsub.s32 1, %v45
    %v47 = vrot.slane %v38, %v46
    %v66 = vunpack.c.l.b16 %v16
    %v67 = vunpack.c.l.b16 %v17
    %v68 = vunpack.c.l.b16 %v18
    %v69 = vunpack.c.l.b16 %v19
    %v70 = vunpack.c.l.b16 %v20
    %v71 = vunpack.c.l.b16 %v21
    %v72 = vunpack.c.l.b16 %v22
    %v73 = vunpack.c.l.b16 %v23
    %v74 = vunpack.c.l.b16 %v24
    %v75 = vunpack.c.l.b16 %v25
    %v76 = vunpack.c.l.b16 %v26
    %v77 = vunpack.c.l.b16 %v27
    %v78 = vunpack.c.l.b16 %v28
    %v79 = vunpack.c.l.b16 %v29
    %v80 = vunpack.c.l.b16 %v30
    %v81 = vunpack.c.l.b16 %v31
    %v82 = vpack.c.b16 %v67, %v66
    %v83 = vpack.c.b16 %v69, %v68
    %v84 = vpack.c.b16 %v71, %v70
    %v85 = vpack.c.b16 %v73, %v72
    %v86 = vpack.c.b16 %v75, %v74
    %v87 = vpack.c.b16 %v77, %v76
    %v88 = vpack.c.b16 %v79, %v78
    %v89 = vpack.c.b16 %v81, %v80
    %v96 = vunpack.c.l.b16 %v32
    %v97 = vunpack.c.h.b16 %v32
    %v98 = vunpack.c.l.b16 %v33
    %v99 = vunpack.c.h.b16 %v33
    %v100 = vunpack.c.l.b16 %v34
    %v101 = vunpack.c.h.b16 %v34
    %v102 = vunpack.c.l.b16 %v35
    %v103 = vunpack.c.h.b16 %v35
    %v104 = vunpack.c.l.b16 %v36
    %v105 = vunpack.c.h.b16 %v36
    %v106 = vunpack.c.l.b16 %v37
    %v107 = vunpack.c.h.b16 %v37
    %v108 = vpack.c.b16 %v98, %v96
    %v109 = vpack.c.b16 %v99, %v97
    %v110 = vpack.c.b16 %v102, %v100
    %v111 = vpack.c.b16 %v103, %v101
    %v112 = vpack.c.b16 %v106, %v104
    %v113 = vpack.c.b16 %v107, %v105
    %vm120 = vcmask 392192
    %v122 = vsel %vm120, %v82, 0
    %v125 = vsel %vm120, %v83, 0
    %v128 = vsel %vm120, %v84, 0
    %v131 = vsel %vm120, %v85, 0
    %v134 = vsel %vm120, %v86, 0
    %v137 = vsel %vm120, %v87, 0
    %v140 = vsel %vm120, %v88, 0
    %v143 = vsel %vm120, %v89, 0
    %145 = vmatprep.subr.bf16.mxu0 %v109
    %146 = vmatpush1.bf16.msra.mxu0 %v108
    %147 = vmatprep.subr.bf16.mxu0 %v111
    %148 = vmatpush1.bf16.msra.mxu0 %v110
    %149 = vmatprep.subr.bf16.mxu0 %v113
    %150 = vmatpush1.bf16.msra.mxu0 %v112
    %151 = vmatprep.subr.bf16.mxu0 0
    %152 = vmatpush1.bf16.msra.mxu0 0
    %153 = vmatprep.subr.bf16.mxu0 0
    %154 = vmatpush1.bf16.msra.mxu0 0
    %155 = vmatprep.subr.bf16.mxu0 0
    %156 = vmatpush1.bf16.msra.mxu0 0
    %157 = vmatprep.subr.bf16.mxu0 0
    %158 = vmatpush1.bf16.msra.mxu0 0
    %159 = vmatprep.subr.bf16.mxu0 0
    %160 = vmatpush1.bf16.msra.mxu0 0
    %161 = vmatprep.subr.bf16.mxu0 0
    %162 = vmatpush1.bf16.msra.mxu0 0
    %163 = vmatprep.subr.bf16.mxu0 0
    %164 = vmatpush1.bf16.msra.mxu0 0
    %165 = vmatprep.subr.bf16.mxu0 0
    %166 = vmatpush1.bf16.msra.mxu0 0
    %167 = vmatprep.subr.bf16.mxu0 0
    %168 = vmatpush1.bf16.msra.mxu0 0
    %169 = vmatprep.subr.bf16.mxu0 0
    %170 = vmatpush1.bf16.msra.mxu0 0
    %171 = vmatprep.subr.bf16.mxu0 0
    %172 = vmatpush1.bf16.msra.mxu0 0
    %173 = vmatprep.subr.bf16.mxu0 0
    %174 = vmatpush1.bf16.msra.mxu0 0
    %175 = vmatprep.subr.bf16.mxu0 0
    %176 = vmatpush1.bf16.msra.mxu0 0
    %177 = vmatprep.mubr.bf16.mxu0 0
    %178 = vmatmul.mubr.bf16.gmra.mrb[0].mxu0 %v122
    %v179 = vpop.f32.mrb[0].mxu0
    %v180 = vadd.f32 %v43, %v179
    %v181 = vpop.f32.mrb[0].mxu0
    %v182 = vadd.f32 %v47, %v181
    %v183 = vpop.f32.mrb[0].mxu0
    %v184 = vadd.f32 %v43, %v183
    %v185 = vpop.f32.mrb[0].mxu0
    %v186 = vadd.f32 %v47, %v185
    %187 = vmatprep.mubr.bf16.mxu0 0
    %188 = vmatmul.mubr.bf16.gmra.mrb[0].mxu0 %v125
    %v189 = vpop.f32.mrb[0].mxu0
    %v190 = vadd.f32 %v43, %v189
    %v191 = vpop.f32.mrb[0].mxu0
    %v192 = vadd.f32 %v47, %v191
    %v193 = vpop.f32.mrb[0].mxu0
    %v194 = vadd.f32 %v43, %v193
    %v195 = vpop.f32.mrb[0].mxu0
    %v196 = vadd.f32 %v47, %v195
    %197 = vmatprep.mubr.bf16.mxu0 0
    %198 = vmatmul.mubr.bf16.gmra.mrb[0].mxu0 %v128
    %v199 = vpop.f32.mrb[0].mxu0
    %v200 = vadd.f32 %v43, %v199
    %v201 = vpop.f32.mrb[0].mxu0
    %v202 = vadd.f32 %v47, %v201
    %v203 = vpop.f32.mrb[0].mxu0
    %v204 = vadd.f32 %v43, %v203
    %v205 = vpop.f32.mrb[0].mxu0
    %v206 = vadd.f32 %v47, %v205
    %207 = vmatprep.mubr.bf16.mxu0 0
    %208 = vmatmul.mubr.bf16.gmra.mrb[0].mxu0 %v131
    %v209 = vpop.f32.mrb[0].mxu0
    %v210 = vadd.f32 %v43, %v209
    %v211 = vpop.f32.mrb[0].mxu0
    %v212 = vadd.f32 %v47, %v211
    %v213 = vpop.f32.mrb[0].mxu0
    %v214 = vadd.f32 %v43, %v213
    %v215 = vpop.f32.mrb[0].mxu0
    %v216 = vadd.f32 %v47, %v215
    %217 = vmatprep.mubr.bf16.mxu0 0
    %218 = vmatmul.mubr.bf16.gmra.mrb[0].mxu0 %v134
    %v219 = vpop.f32.mrb[0].mxu0
    %v220 = vadd.f32 %v43, %v219
    %v221 = vpop.f32.mrb[0].mxu0
    %v222 = vadd.f32 %v47, %v221
    %v223 = vpop.f32.mrb[0].mxu0
    %v224 = vadd.f32 %v43, %v223
    %v225 = vpop.f32.mrb[0].mxu0
    %v226 = vadd.f32 %v47, %v225
    %227 = vmatprep.mubr.bf16.mxu0 0
    %228 = vmatmul.mubr.bf16.gmra.mrb[0].mxu0 %v137
    %v229 = vpop.f32.mrb[0].mxu0
    %v230 = vadd.f32 %v43, %v229
    %v231 = vpop.f32.mrb[0].mxu0
    %v232 = vadd.f32 %v47, %v231
    %v233 = vpop.f32.mrb[0].mxu0
    %v234 = vadd.f32 %v43, %v233
    %v235 = vpop.f32.mrb[0].mxu0
    %v236 = vadd.f32 %v47, %v235
    %237 = vmatprep.mubr.bf16.mxu0 0
    %238 = vmatmul.mubr.bf16.gmra.mrb[0].mxu0 %v140
    %v239 = vpop.f32.mrb[0].mxu0
    %v240 = vadd.f32 %v43, %v239
    %v241 = vpop.f32.mrb[0].mxu0
    %v242 = vadd.f32 %v47, %v241
    %v243 = vpop.f32.mrb[0].mxu0
    %v244 = vadd.f32 %v43, %v243
    %v245 = vpop.f32.mrb[0].mxu0
    %v246 = vadd.f32 %v47, %v245
    %247 = vmatprep.mubr.bf16.mxu0 0
    %248 = vmatmul.mubr.bf16.gmra.mrb[0].mxu0 %v143
    %v249 = vpop.f32.mrb[0].mxu0
    %v250 = vadd.f32 %v43, %v249
    %v251 = vpop.f32.mrb[0].mxu0
    %v252 = vadd.f32 %v47, %v251
    %v253 = vpop.f32.mrb[0].mxu0
    %v254 = vadd.f32 %v43, %v253
    %v255 = vpop.f32.mrb[0].mxu0
    %v256 = vadd.f32 %v47, %v255
    %257 = vdwg.mxu0
    %v258 = vmax.f32 %v180, 0.0
    %v259 = vmax.f32 %v182, 0.0
    %v260 = vmax.f32 %v184, 0.0
    %v261 = vmax.f32 %v186, 0.0
    %v262 = vmax.f32 %v190, 0.0
    %v263 = vmax.f32 %v192, 0.0
    %v264 = vmax.f32 %v194, 0.0
    %v265 = vmax.f32 %v196, 0.0
    %v266 = vmax.f32 %v200, 0.0
    %v267 = vmax.f32 %v202, 0.0
    %v268 = vmax.f32 %v204, 0.0
    %v269 = vmax.f32 %v206, 0.0
    %v270 = vmax.f32 %v210, 0.0
    %v271 = vmax.f32 %v212, 0.0
    %v272 = vmax.f32 %v214, 0.0
    %v273 = vmax.f32 %v216, 0.0
    %v274 = vmax.f32 %v220, 0.0
    %v275 = vmax.f32 %v222, 0.0
    %v276 = vmax.f32 %v224, 0.0
    %v277 = vmax.f32 %v226, 0.0
    %v278 = vmax.f32 %v230, 0.0
    %v279 = vmax.f32 %v232, 0.0
    %v280 = vmax.f32 %v234, 0.0
    %v281 = vmax.f32 %v236, 0.0
    %v282 = vmax.f32 %v240, 0.0
    %v283 = vmax.f32 %v242, 0.0
    %v284 = vmax.f32 %v244, 0.0
    %v285 = vmax.f32 %v246, 0.0
    %v286 = vmax.f32 %v250, 0.0
    %v287 = vmax.f32 %v252, 0.0
    %v288 = vmax.f32 %v254, 0.0
    %v289 = vmax.f32 %v256, 0.0
    %v290 = vpack.c.bf16 %v260, %v258
    %v291 = vpack.c.bf16 %v261, %v259
    %v292 = vpack.c.bf16 %v264, %v262
    %v293 = vpack.c.bf16 %v265, %v263
    %v294 = vpack.c.bf16 %v268, %v266
    %v295 = vpack.c.bf16 %v269, %v267
    %v296 = vpack.c.bf16 %v272, %v270
    %v297 = vpack.c.bf16 %v273, %v271
    %v298 = vpack.c.bf16 %v276, %v274
    %v299 = vpack.c.bf16 %v277, %v275
    %v300 = vpack.c.bf16 %v280, %v278
    %v301 = vpack.c.bf16 %v281, %v279
    %v302 = vpack.c.bf16 %v284, %v282
    %v303 = vpack.c.bf16 %v285, %v283
    %v304 = vpack.c.bf16 %v288, %v286
    %v305 = vpack.c.bf16 %v289, %v287
    %v322 = vunpack.c.l.b16 %v290
    %v323 = vunpack.c.l.b16 %v291
    %v324 = vunpack.c.h.b16 %v290
    %v325 = vunpack.c.h.b16 %v291
    %v326 = vunpack.c.l.b16 %v292
    %v327 = vunpack.c.l.b16 %v293
    %v328 = vunpack.c.h.b16 %v292
    %v329 = vunpack.c.h.b16 %v293
    %v330 = vunpack.c.l.b16 %v294
    %v331 = vunpack.c.l.b16 %v295
    %v332 = vunpack.c.h.b16 %v294
    %v333 = vunpack.c.h.b16 %v295
    %v334 = vunpack.c.l.b16 %v296
    %v335 = vunpack.c.l.b16 %v297
    %v336 = vunpack.c.h.b16 %v296
    %v337 = vunpack.c.h.b16 %v297
    %v338 = vunpack.c.l.b16 %v298
    %v339 = vunpack.c.l.b16 %v299
    %v340 = vunpack.c.h.b16 %v298
    %v341 = vunpack.c.h.b16 %v299
    %v342 = vunpack.c.l.b16 %v300
    %v343 = vunpack.c.l.b16 %v301
    %v344 = vunpack.c.h.b16 %v300
    %v345 = vunpack.c.h.b16 %v301
    %v346 = vunpack.c.l.b16 %v302
    %v347 = vunpack.c.l.b16 %v303
    %v348 = vunpack.c.h.b16 %v302
    %v349 = vunpack.c.h.b16 %v303
    %v350 = vunpack.c.l.b16 %v304
    %v351 = vunpack.c.l.b16 %v305
    %v352 = vunpack.c.h.b16 %v304
    %v353 = vunpack.c.h.b16 %v305
    %v354 = vpack.c.b16 %v323, %v322
    %v355 = vpack.c.b16 %v325, %v324
    %v356 = vpack.c.b16 %v327, %v326
    %v357 = vpack.c.b16 %v329, %v328
    %v358 = vpack.c.b16 %v331, %v330
    %v359 = vpack.c.b16 %v333, %v332
    %v360 = vpack.c.b16 %v335, %v334
    %v361 = vpack.c.b16 %v337, %v336
    %v362 = vpack.c.b16 %v339, %v338
    %v363 = vpack.c.b16 %v341, %v340
    %v364 = vpack.c.b16 %v343, %v342
    %v365 = vpack.c.b16 %v345, %v344
    %v366 = vpack.c.b16 %v347, %v346
    %v367 = vpack.c.b16 %v349, %v348
    %v368 = vpack.c.b16 %v351, %v350
    %v369 = vpack.c.b16 %v353, %v352
    %386 = vst [vmem:[#allocation2] sm:$0xff] %v354
    %387 = vst [vmem:[#allocation2 + $0x8] sm:$0xff] %v355
    %388 = vst [vmem:[#allocation2 + $0x10] sm:$0xff] %v356
    %389 = vst [vmem:[#allocation2 + $0x18] sm:$0xff] %v357
    %390 = vst [vmem:[#allocation2 + $0x20] sm:$0xff] %v358
    %391 = vst [vmem:[#allocation2 + $0x28] sm:$0xff] %v359
    %392 = vst [vmem:[#allocation2 + $0x30] sm:$0xff] %v360
    %393 = vst [vmem:[#allocation2 + $0x38] sm:$0xff] %v361
    %394 = vst [vmem:[#allocation2 + $0x40] sm:$0xff] %v362
    %395 = vst [vmem:[#allocation2 + $0x48] sm:$0xff] %v363
    %396 = vst [vmem:[#allocation2 + $0x50] sm:$0xff] %v364
    %397 = vst [vmem:[#allocation2 + $0x58] sm:$0xff] %v365
    %398 = vst [vmem:[#allocation2 + $0x60] sm:$0xff] %v366
    %399 = vst [vmem:[#allocation2 + $0x68] sm:$0xff] %v367
    %400 = vst [vmem:[#allocation2 + $0x70] sm:$0xff] %v368
    %401 = vst [vmem:[#allocation2 + $0x78] sm:$0xff] %v369
    // Predicated region
    $region14: #{tpu_custom_call.1} parent=1 // pred_check
      _
    $region15: #{tpu_custom_call.1} parent=1 // pred_check_branch
      %403 = sbr.rel (0) target = $region17
    $region16: #{tpu_custom_call.1} parent=1 // pred_region
      %s405 = ssub.s32 2048, 2048
      %406 = vsyncadd [#allocation3], %s405
      %s407 = sshll.u32 [#allocation2], 4
      %s408 = int_to_ptr.vmem [resolvable:$true] %s407
      %413 = dma.vmem_to_hbm [thread:$0]  %s408, 2048, %s3, [#allocation3], 128, 128, 8
    $region17: #{tpu_custom_call.1} parent=1 // pred_fallthru
      _
    // Predicated region
    $region18: #{tpu_custom_call.1} parent=1 // pred_check
      _
    $region19: #{tpu_custom_call.1} parent=1 // pred_check_branch
      %415 = sbr.rel (0) target = $region21
    $region20: #{tpu_custom_call.1} parent=1 // pred_region
      %416 = dma.done [#allocation3], 2048
    $region21: #{tpu_custom_call.1} parent=1 // pred_fallthru
      _
    %417 = vsyncpa [#allocation3], 1

</llo_original>
